<compile_context>
chip_gen: v7x
topology: tpu7x:2x2x1
jax: 0.10.0
libtpu: 0.0.40
codegen_flags: <defaults>
</compile_context>

<pallas_src>
import jax
import jax.numpy as jnp
from jax.experimental import pallas as pl
from jax.experimental.pallas import tpu as pltpu


# ----------------------------- Pallas kernel -------------------------------

def _negate_kernel(g_ref, o_ref):
    # Backward pass of RevGrad: negate the incoming cotangent tile.
    o_ref[...] = -g_ref[...]


# --------------------------- backward negate path ---------------------------

_LANE = 512        # lane-dense last dim (multiple of 128 -> full-width stores)
_ROW_TILE = 1024   # sublane tile; 1024*512*4B = 2 MiB per f32 tile


def _sublane_multiple(dtype) -> int:
    # Sublane packing granularity: 8 for 4-byte, 16 for 2-byte, 32 for 1-byte.
    itemsize = jnp.dtype(dtype).itemsize
    return max(8, 32 // max(itemsize, 1))


def _negate_pallas(g):
    """Return -g, computed with a tiled lane-dense Pallas kernel."""
    if g.size == 0:
        return g

    orig_shape = g.shape
    flat = g.reshape(-1)
    n = flat.shape[0]

    # Pad the flat cotangent so it reshapes into a (rows, _LANE) slab with
    # rows a multiple of the sublane packing (keeps the (8,128) block rule
    # satisfied for any dtype and any original shape).
    sub = _sublane_multiple(g.dtype)
    chunk = sub * _LANE
    padded = ((n + chunk - 1) // chunk) * chunk
    if padded != n:
        flat = jnp.pad(flat, (0, padded - n))
    rows = padded // _LANE
    slab = flat.reshape(rows, _LANE)

    # Tile rows: full-extent block for small inputs, ~2 MiB tiles otherwise.
    tr = min(_ROW_TILE, rows)
    grid = (pl.cdiv(rows, tr),)

    out = pl.pallas_call(
        _negate_kernel,
        out_shape=jax.ShapeDtypeStruct((rows, _LANE), slab.dtype),
        grid=grid,
        in_specs=[pl.BlockSpec((tr, _LANE), lambda i: (i, 0))],
        out_specs=pl.BlockSpec((tr, _LANE), lambda i: (i, 0)),
        input_output_aliases={0: 0},  # negate in place; g is dead after bwd
        compiler_params=pltpu.CompilerParams(
            dimension_semantics=("parallel",),
        ),
    )(slab)

    out_flat = out.reshape(-1)
    if padded != n:
        out_flat = out_flat[:n]
    return out_flat.reshape(orig_shape)


# ------------------------- custom_vjp gradient flip -------------------------

@jax.custom_vjp
def reversal_layer(x):
    """Forward: identity (no Pallas launch, no HBM traffic)."""
    return x


def _reversal_fwd(x):
    return x, None


def _reversal_bwd(_, g):
    return (_negate_pallas(g),)


reversal_layer.defvjp(_reversal_fwd, _reversal_bwd)


# ----------------------------------- main -----------------------------------

if __name__ == "__main__":
    key = jax.random.PRNGKey(0)
    # NCHW, consistent with how this layer is typically applied in the module.
    x = jax.random.normal(key, (2, 4, 16, 16), dtype=jnp.float32)

    # Forward: must be exact identity.
    y = reversal_layer(x)
    y = jax.block_until_ready(y)
    assert y.shape == x.shape and y.dtype == x.dtype
    assert bool(jnp.all(y == x))

    # Backward: gradient must be exactly reversed.
    # d/dx sum(reversal_layer(x)) == -1 everywhere.
    grad = jax.grad(lambda a: jnp.sum(reversal_layer(a)))(x)
    grad = jax.block_until_ready(grad)
    assert grad.shape == x.shape and grad.dtype == x.dtype
    assert bool(jnp.all(grad == -jnp.ones_like(x)))

    # Also exercise a larger, non-divisible shape to hit the tiled/padded path.
    x2 = jax.random.normal(key, (3, 5, 33, 17), dtype=jnp.float32)
    grad2 = jax.grad(lambda a: jnp.sum(reversal_layer(a) * 2.0))(x2)
    grad2 = jax.block_until_ready(grad2)
    assert bool(jnp.allclose(grad2, -2.0 * jnp.ones_like(x2)))

    print("KERNEL_OK")
</pallas_src>

<mosaic_0001>
module attributes {stable_mosaic.version = 11 : i64} {
  func.func @_negate_kernel(%arg0: i32, %arg1: memref<8x512xf32, #tpu.memory_space<vmem>>, %arg2: memref<8x512xf32, #tpu.memory_space<vmem>>) attributes {dimension_semantics = [#tpu.dimension_semantics<parallel>], iteration_bounds = array<i64: 1>, scalar_prefetch = 0 : i64, scratch_operands = 0 : i64, tpu.core_type = #tpu.core_type<tc>, window_params = [{transform_indices = @transform_0, window_bounds = array<i64: 8, 512>}, {transform_indices = @transform_1, window_bounds = array<i64: 8, 512>}]} {
    %c0 = arith.constant 0 : index
    %c0_0 = arith.constant 0 : index
    %0 = vector.load %arg1[%c0, %c0_0] : memref<8x512xf32, #tpu.memory_space<vmem>>, vector<8x512xf32>
    %cst = arith.constant 0.000000e+00 : f32
    %1 = vector.broadcast %cst : f32 to vector<8x512xf32>
    %2 = arith.subf %1, %0 : vector<8x512xf32>
    %c0_1 = arith.constant 0 : index
    %c0_2 = arith.constant 0 : index
    %3 = vector.load %arg2[%c0_1, %c0_2] : memref<8x512xf32, #tpu.memory_space<vmem>>, vector<8x512xf32>
    tpu.vector_store %arg2[%c0_1, %c0_2], %2 {strides = array<i32>} : memref<8x512xf32, #tpu.memory_space<vmem>>, vector<8x512xf32>,
    return
  }
  func.func @transform_0(%arg0: i32) -> (i32, i32) {
    %c0_i32 = arith.constant 0 : i32
    %c0_i32_0 = arith.constant 0 : i32
    return %arg0, %c0_i32 : i32, i32
  }
  func.func @transform_1(%arg0: i32) -> (i32, i32) {
    %c0_i32 = arith.constant 0 : i32
    %c0_i32_0 = arith.constant 0 : i32
    return %arg0, %c0_i32 : i32, i32
  }
}

</mosaic_0001>

<llo_original>
// kernel: tpu_custom_call.1
$region0: #{tpu_custom_call.1}
  #allocation0 [shape = 'u32[]', space=smem, size = 0x4, offset = 0x4, fixed_abs, tag = 'smem constant byte address 0x4 - core index']
  #allocation1 [shape = 'u32[144,128]{1,0:T(1,128)}', space=vmem, size = 0x12000, scoped, tag = 'internal scratch']
  %s0 = inlined_call_operand.hbm [shape: f32[8,512], index: 0, kind: input, shape index: {}, may-alias: {0,1}]
  %s1 = inlined_call_operand.hbm [shape: f32[8,512], index: 1, kind: output, shape index: {}, may-alias: {0,1}]
  %s2 = sld [smem:[#allocation0]]
  $region18: #{tpu_custom_call.1} parent=0
    _
  %s4 = ssub.s32 1, %s2
  %s5 = scalar_select 0, %s4, %s2
  $region1: #{tpu_custom_call.1} parent=0
    #allocation2 [shape = 'u8[16384]{0}', space=vmem, size = 0x4000, scoped, tag = 'input window, operand 0, single buffered']
    #allocation3 [shape = 's32[1]{0}', space=sflag, size = 0x4, scoped, tag = 'scoped memory for tpu_custom_call.1']
    #allocation4 [shape = 's32[1]{0}', space=sflag, size = 0x4, scoped, tag = 'scoped memory for tpu_custom_call.1']
    #allocation5 [shape = 'u8[16384]{0}', space=vmem, size = 0x4000, scoped, tag = 'output window, operand 0, single buffered']
    %6 = vsyncpa [#allocation3], 0
    %7 = vsyncpa [#allocation4], 0
    // Predicated region
    $region2: #{tpu_custom_call.1} parent=1 // pred_check
      _
    $region3: #{tpu_custom_call.1} parent=1 // pred_check_branch
      %9 = sbr.rel (0) target = $region5
    $region4: #{tpu_custom_call.1} parent=1 // pred_region
      %s11 = ssub.s32 512, 512
      %12 = vsyncadd [#allocation3], %s11
      %s14 = sshll.u32 [#allocation2], 4
      %s15 = int_to_ptr.vmem [resolvable:$true] %s14
      %17 = dma.hbm_to_vmem [thread:$0]  %s0, 512, %s15, [#allocation3]
    $region5: #{tpu_custom_call.1} parent=1 // pred_fallthru
      _
    // Predicated region
    $region6: #{tpu_custom_call.1} parent=1 // pred_check
      _
    $region7: #{tpu_custom_call.1} parent=1 // pred_check_branch
      %19 = sbr.rel (0) target = $region9
    $region8: #{tpu_custom_call.1} parent=1 // pred_region
      %20 = dma.done [#allocation3], 512
    $region9: #{tpu_custom_call.1} parent=1 // pred_fallthru
      _
    %v21 = vld [vmem:[#allocation2] sm:$0xff]
    %v22 = vld [vmem:[#allocation2 + $0x8] sm:$0xff]
    %v23 = vld [vmem:[#allocation2 + $0x10] sm:$0xff]
    %v24 = vld [vmem:[#allocation2 + $0x18] sm:$0xff]
    %v25 = vsub.f32 0.0, %v21
    %v26 = vsub.f32 0.0, %v22
    %v27 = vsub.f32 0.0, %v23
    %v28 = vsub.f32 0.0, %v24
    %29 = vst [vmem:[#allocation5] sm:$0xff] %v25
    %30 = vst [vmem:[#allocation5 + $0x8] sm:$0xff] %v26
    %31 = vst [vmem:[#allocation5 + $0x10] sm:$0xff] %v27
    %32 = vst [vmem:[#allocation5 + $0x18] sm:$0xff] %v28
    // Predicated region
    $region10: #{tpu_custom_call.1} parent=1 // pred_check
      _
    $region11: #{tpu_custom_call.1} parent=1 // pred_check_branch
      %34 = sbr.rel (0) target = $region13
    $region12: #{tpu_custom_call.1} parent=1 // pred_region
      %s36 = ssub.s32 512, 512
      %37 = vsyncadd [#allocation4], %s36
      %s39 = sshll.u32 [#allocation5], 4
      %s40 = int_to_ptr.vmem [resolvable:$true] %s39
      %42 = dma.vmem_to_hbm [thread:$0]  %s40, 512, %s1, [#allocation4]
    $region13: #{tpu_custom_call.1} parent=1 // pred_fallthru
      _
    // Predicated region
    $region14: #{tpu_custom_call.1} parent=1 // pred_check
      _
    $region15: #{tpu_custom_call.1} parent=1 // pred_check_branch
      %44 = sbr.rel (0) target = $region17
    $region16: #{tpu_custom_call.1} parent=1 // pred_region
      %45 = dma.done [#allocation4], 512
    $region17: #{tpu_custom_call.1} parent=1 // pred_fallthru
      _
    %46 = vsyncpa [#allocation3], 1
    %47 = vsyncpa [#allocation4], 1

</llo_original>
